<compile_context>
chip_gen: v7x
topology: tpu7x:2x2x1
jax: 0.10.0
libtpu: 0.0.40
codegen_flags: <defaults>
</compile_context>

<pallas_src>
import functools

import jax
import jax.numpy as jnp
from jax import lax
from jax.experimental import pallas as pl
from jax.experimental.pallas import tpu as pltpu


COS_EPS = 1e-8    # F.cosine_similarity default eps
SCORE_EPS = 1e-8  # the "+ 1e-08" in score_func


def _round_up(x, m):
    return ((x + m - 1) // m) * m


def _pick_tiles(b_pad, a_pad, d, itemsize, budget_bytes=24 * 1024 * 1024):
    """Pick (TB, TA) so the double-buffered working set fits comfortably in VMEM."""
    tb = min(256, b_pad)
    ta = min(256, a_pad)

    def est(tb_, ta_):
        # 2x (double buffer) input tiles + inv-norm vectors + output tile (+acc)
        return (2 * (tb_ * d + ta_ * d) * itemsize
                + 2 * (ta_ + tb_) * 4
                + 2 * tb_ * ta_ * 4)

    while est(tb, ta) > budget_bytes and (tb > 8 or ta > 128):
        if ta > 128:
            ta = _round_up(ta // 2, 128)
        else:
            tb = _round_up(tb // 2, 8)
    return tb, ta


def _classifier_kernel(e_ref, w_ref, inve_ref, invw_ref, o_ref, *, temp):
    # e_ref:    (TB, D)  embedding tile
    # w_ref:    (TA, D)  anchor tile
    # inve_ref: (TB, 1)  precomputed 1 / max(||emb||, eps)
    # invw_ref: (1, TA)  precomputed 1 / max(||anchor||, eps)
    # o_ref:    (TB, TA) score tile
    e = e_ref[...]
    w = w_ref[...]

    # MXU matmul contracting the last (feature) dim of both operands directly;
    # no explicit transpose of the anchor tile.  f32 accumulation.
    dots = lax.dot_general(
        e, w,
        dimension_numbers=(((1,), (1,)), ((), ())),
        preferred_element_type=jnp.float32,
    )  # (TB, TA)

    # Fused epilogue:
    #   score = dots * (inv_e * 0.5/temp * inv_w) + (0.5 + eps)/temp
    row_scale = inve_ref[...].astype(jnp.float32) * (0.5 / temp)        # (TB, 1)
    scale = row_scale * invw_ref[...].astype(jnp.float32)               # (TB, TA)
    bias = (0.5 + SCORE_EPS) / temp
    o_ref[...] = (dots * scale + bias).astype(o_ref.dtype)


def classifier_forward(anchors, emb, temp):
    """anchors: (A, D), emb: (B, D) -> scores (B, A) in float32."""
    A, D = anchors.shape
    B, D2 = emb.shape
    assert D == D2

    temp = float(temp)

    # Pad to lane/sublane-friendly sizes (A -> multiple of 128 so the output
    # last dim is lane-dense; B -> multiple of 8).
    B_pad = _round_up(B, 8)
    A_pad = _round_up(A, 128)

    TB, TA = _pick_tiles(B_pad, A_pad, D, jnp.dtype(emb.dtype).itemsize)
    B_pad = _round_up(B_pad, TB)
    A_pad = _round_up(A_pad, TA)

    emb_p = jnp.pad(emb, ((0, B_pad - B), (0, 0)))
    anchors_p = jnp.pad(anchors, ((0, A_pad - A), (0, 0)))

    # Hoisted inverse norms (each computed exactly once in the wrapper).
    w32 = anchors_p.astype(jnp.float32)
    inv_w = (1.0 / jnp.maximum(
        jnp.sqrt(jnp.sum(w32 * w32, axis=-1)), COS_EPS)).reshape(1, A_pad)

    e32 = emb_p.astype(jnp.float32)
    inv_e = (1.0 / jnp.maximum(
        jnp.sqrt(jnp.sum(e32 * e32, axis=-1)), COS_EPS)).reshape(B_pad, 1)

    kernel = functools.partial(_classifier_kernel, temp=temp)

    out_padded = pl.pallas_call(
        kernel,
        out_shape=jax.ShapeDtypeStruct((B_pad, A_pad), jnp.float32),
        grid_spec=pl.GridSpec(
            grid=(B_pad // TB, A_pad // TA),
            in_specs=[
                pl.BlockSpec((TB, D), lambda i, j: (i, 0)),   # embeddings
                pl.BlockSpec((TA, D), lambda i, j: (j, 0)),   # anchors
                pl.BlockSpec((TB, 1), lambda i, j: (i, 0)),   # emb inv-norms
                pl.BlockSpec((1, TA), lambda i, j: (0, j)),   # anchor inv-norms
            ],
            out_specs=pl.BlockSpec((TB, TA), lambda i, j: (i, j)),
        ),
        compiler_params=pltpu.CompilerParams(
            dimension_semantics=("parallel", "parallel"),
            vmem_limit_bytes=64 * 1024 * 1024,
        ),
    )(emb_p, anchors_p, inv_e, inv_w)

    return out_padded[:B, :A]


def classifier_reference(anchors, emb, temp):
    """Pure-JAX reference mirroring the PyTorch forward."""
    w = anchors[None, :, :].astype(jnp.float32)   # (1, A, D)
    x = emb[:, None, :].astype(jnp.float32)       # (B, 1, D)
    dots = jnp.sum(w * x, axis=-1)
    wn = jnp.maximum(jnp.linalg.norm(w, axis=-1), COS_EPS)
    xn = jnp.maximum(jnp.linalg.norm(x, axis=-1), COS_EPS)
    cos = dots / (wn * xn)
    return ((1.0 + cos) / 2.0 + SCORE_EPS) / temp


if __name__ == "__main__":
    key = jax.random.PRNGKey(0)
    k1, k2 = jax.random.split(key)

    # Small shapes; B and A deliberately NOT tile-aligned to exercise padding.
    B, A, D = 10, 200, 128   # batch, num_anchors, embedding dim
    temp = 0.1               # args.temp

    anchors = jax.random.normal(k1, (A, D), dtype=jnp.float32)
    emb = jax.random.normal(k2, (B, D), dtype=jnp.float32)

    out = classifier_forward(anchors, emb, temp)
    out = jax.block_until_ready(out)

    ref = classifier_reference(anchors, emb, temp)
    assert out.shape == (B, A), out.shape
    assert jnp.allclose(out, ref, atol=1e-4, rtol=1e-4), (
        float(jnp.max(jnp.abs(out - ref)))
    )

    print("KERNEL_OK")
</pallas_src>

<mosaic_0001>
module attributes {stable_mosaic.version = 11 : i64} {
  func.func @_classifier_kernel(%arg0: i32, %arg1: i32, %arg2: memref<16x128xf32, #tpu.memory_space<vmem>>, %arg3: memref<256x128xf32, #tpu.memory_space<vmem>>, %arg4: memref<16x1xf32, #tpu.memory_space<vmem>>, %arg5: memref<1x256xf32, #tpu.memory_space<vmem>>, %arg6: memref<16x256xf32, #tpu.memory_space<vmem>>) attributes {dimension_semantics = [#tpu.dimension_semantics<parallel>, #tpu.dimension_semantics<parallel>], iteration_bounds = array<i64: 1, 1>, scalar_prefetch = 0 : i64, scratch_operands = 0 : i64, tpu.core_type = #tpu.core_type<tc>, window_params = [{transform_indices = @transform_0, window_bounds = array<i64: 16, 128>}, {transform_indices = @transform_1, window_bounds = array<i64: 256, 128>}, {transform_indices = @transform_2, window_bounds = array<i64: 16, 1>}, {transform_indices = @transform_3, window_bounds = array<i64: 1, 256>}, {transform_indices = @transform_4, window_bounds = array<i64: 16, 256>}]} {
    %c0 = arith.constant 0 : index
    %c0_0 = arith.constant 0 : index
    %0 = vector.load %arg2[%c0, %c0_0] : memref<16x128xf32, #tpu.memory_space<vmem>>, vector<16x128xf32>
    %c0_1 = arith.constant 0 : index
    %c0_2 = arith.constant 0 : index
    %1 = vector.load %arg3[%c0_1, %c0_2] : memref<256x128xf32, #tpu.memory_space<vmem>>, vector<256x128xf32>
    %cst = arith.constant dense<0.000000e+00> : vector<16x256xf32>
    %2 = tpu.matmul %0, %1, %cst {dimension_numbers = #tpu.dot_dimension_numbers<[1], [1], [0], [0], [0, 0, 1, 0], [], []>} : vector<16x128xf32>, vector<256x128xf32>, vector<16x256xf32> -> vector<16x256xf32>
    %c0_3 = arith.constant 0 : index
    %c0_4 = arith.constant 0 : index
    %3 = vector.load %arg4[%c0_3, %c0_4] : memref<16x1xf32, #tpu.memory_space<vmem>>, vector<16x1xf32>
    %cst_5 = arith.constant 5.000000e+00 : f32
    %4 = vector.broadcast %cst_5 : f32 to vector<16x1xf32>
    %5 = arith.mulf %3, %4 : vector<16x1xf32>
    %c0_6 = arith.constant 0 : index
    %c0_7 = arith.constant 0 : index
    %6 = vector.load %arg5[%c0_6, %c0_7] : memref<1x256xf32, #tpu.memory_space<vmem>>, vector<1x256xf32>
    %7 = vector.broadcast %5 : vector<16x1xf32> to vector<16x256xf32>
    %8 = vector.broadcast %6 : vector<1x256xf32> to vector<16x256xf32>
    %9 = arith.mulf %7, %8 : vector<16x256xf32>
    %10 = arith.mulf %2, %9 : vector<16x256xf32>
    %cst_8 = arith.constant 5.000000e+00 : f32
    %11 = vector.broadcast %cst_8 : f32 to vector<16x256xf32>
    %12 = arith.addf %10, %11 : vector<16x256xf32>
    %c0_9 = arith.constant 0 : index
    %c0_10 = arith.constant 0 : index
    %13 = vector.load %arg6[%c0_9, %c0_10] : memref<16x256xf32, #tpu.memory_space<vmem>>, vector<16x256xf32>
    tpu.vector_store %arg6[%c0_9, %c0_10], %12 {strides = array<i32>} : memref<16x256xf32, #tpu.memory_space<vmem>>, vector<16x256xf32>,
    return
  }
  func.func @transform_0(%arg0: i32, %arg1: i32) -> (i32, i32) {
    %c0_i32 = arith.constant 0 : i32
    %c0_i32_0 = arith.constant 0 : i32
    return %arg0, %c0_i32 : i32, i32
  }
  func.func @transform_1(%arg0: i32, %arg1: i32) -> (i32, i32) {
    %c0_i32 = arith.constant 0 : i32
    %c0_i32_0 = arith.constant 0 : i32
    return %arg1, %c0_i32 : i32, i32
  }
  func.func @transform_2(%arg0: i32, %arg1: i32) -> (i32, i32) {
    %c0_i32 = arith.constant 0 : i32
    %c0_i32_0 = arith.constant 0 : i32
    return %arg0, %c0_i32 : i32, i32
  }
  func.func @transform_3(%arg0: i32, %arg1: i32) -> (i32, i32) {
    %c0_i32 = arith.constant 0 : i32
    %c0_i32_0 = arith.constant 0 : i32
    return %c0_i32, %arg1 : i32, i32
  }
  func.func @transform_4(%arg0: i32, %arg1: i32) -> (i32, i32) {
    %c0_i32 = arith.constant 0 : i32
    return %arg0, %arg1 : i32, i32
  }
}

</mosaic_0001>

<llo_original>
// kernel: tpu_custom_call.1
$region0: #{tpu_custom_call.1}
  #allocation0 [shape = 'u32[]', space=smem, size = 0x4, offset = 0x4, fixed_abs, tag = 'smem constant byte address 0x4 - core index']
  #allocation1 [shape = 'u32[144,128]{1,0:T(1,128)}', space=vmem, size = 0x12000, scoped, tag = 'internal scratch']
  %s0 = inlined_call_operand.hbm [shape: f32[16,128], index: 0, kind: input, shape index: {}]
  %s1 = inlined_call_operand.hbm [shape: f32[256,128], index: 1, kind: input, shape index: {}]
  %s2 = inlined_call_operand.hbm [shape: f32[16,1], index: 2, kind: input, shape index: {}]
  %s3 = inlined_call_operand.hbm [shape: f32[1,256], index: 3, kind: input, shape index: {}]
  %s4 = inlined_call_operand.hbm [shape: f32[16,256], index: 4, kind: output, shape index: {}]
  %s5 = sld [smem:[#allocation0]]
  $region42: #{tpu_custom_call.1} parent=0
    _
  %s7 = ssub.s32 1, %s5
  %s8 = scalar_select 0, %s7, %s5
  $region1: #{tpu_custom_call.1} parent=0
    #allocation2 [shape = 'u8[8192]{0}', space=vmem, size = 0x2000, scoped, tag = 'input window, operand 0, single buffered']
    #allocation3 [shape = 's32[1]{0}', space=sflag, size = 0x4, scoped, tag = 'scoped memory for tpu_custom_call.1']
    #allocation4 [shape = 's32[1]{0}', space=sflag, size = 0x4, scoped, tag = 'scoped memory for tpu_custom_call.1']
    #allocation5 [shape = 'u8[131072]{0}', space=vmem, size = 0x20000, scoped, tag = 'input window, operand 1, single buffered']
    #allocation6 [shape = 's32[1]{0}', space=sflag, size = 0x4, scoped, tag = 'scoped memory for tpu_custom_call.1']
    #allocation7 [shape = 'u8[8192]{0}', space=vmem, size = 0x2000, scoped, tag = 'input window, operand 2, single buffered']
    #allocation8 [shape = 'u8[1024]{0}', space=vmem, size = 0x400, scoped, tag = 'input window, operand 3, single buffered']
    #allocation9 [shape = 's32[1]{0}', space=sflag, size = 0x4, scoped, tag = 'scoped memory for tpu_custom_call.1']
    #allocation10 [shape = 'u8[16384]{0}', space=vmem, size = 0x4000, scoped, tag = 'output window, operand 0, single buffered']
    %9 = vsyncpa [#allocation3], 0
    %10 = vsyncpa [#allocation6], 0
    %11 = vsyncpa [#allocation9], 0
    %12 = vsyncpa [#allocation4], 0
    // Predicated region
    $region2: #{tpu_custom_call.1} parent=1 // pred_check
      _
    $region3: #{tpu_custom_call.1} parent=1 // pred_check_branch
      %14 = sbr.rel (0) target = $region5
    $region4: #{tpu_custom_call.1} parent=1 // pred_region
      %s16 = ssub.s32 256, 256
      %17 = vsyncadd [#allocation3], %s16
      %s18 = sshll.u32 [#allocation2], 4
      %s19 = int_to_ptr.vmem [resolvable:$true] %s18
      %24 = dma.hbm_to_vmem [thread:$0]  %s0, 256, %s19, [#allocation3], 128, 128, 8
    $region5: #{tpu_custom_call.1} parent=1 // pred_fallthru
      _
    // Predicated region
    $region6: #{tpu_custom_call.1} parent=1 // pred_check
      _
    $region7: #{tpu_custom_call.1} parent=1 // pred_check_branch
      %26 = sbr.rel (0) target = $region9
    $region8: #{tpu_custom_call.1} parent=1 // pred_region
      %s28 = ssub.s32 4096, 4096
      %29 = vsyncadd [#allocation6], %s28
      %s30 = sshll.u32 [#allocation5], 4
      %s31 = int_to_ptr.vmem [resolvable:$true] %s30
      %36 = dma.hbm_to_vmem [thread:$0]  %s1, 4096, %s31, [#allocation6], 128, 128, 8
    $region9: #{tpu_custom_call.1} parent=1 // pred_fallthru
      _
    // Predicated region
    $region10: #{tpu_custom_call.1} parent=1 // pred_check
      _
    $region11: #{tpu_custom_call.1} parent=1 // pred_check_branch
      %38 = sbr.rel (0) target = $region13
    $region12: #{tpu_custom_call.1} parent=1 // pred_region
      %s40 = ssub.s32 256, 256
      %41 = vsyncadd [#allocation6], %s40
      %s42 = sshll.u32 [#allocation7], 4
      %s43 = int_to_ptr.vmem [resolvable:$true] %s42
      %48 = dma.hbm_to_vmem [thread:$0]  %s2, 256, %s43, [#allocation6], 128, 128, 8
    $region13: #{tpu_custom_call.1} parent=1 // pred_fallthru
      _
    // Predicated region
    $region14: #{tpu_custom_call.1} parent=1 // pred_check
      _
    $region15: #{tpu_custom_call.1} parent=1 // pred_check_branch
      %50 = sbr.rel (0) target = $region17
    $region16: #{tpu_custom_call.1} parent=1 // pred_region
      %s52 = ssub.s32 32, 32
      %53 = vsyncadd [#allocation9], %s52
      %s55 = sshll.u32 [#allocation8], 4
      %s56 = int_to_ptr.vmem [resolvable:$true] %s55
      %58 = dma.hbm_to_vmem [thread:$0]  %s3, 32, %s56, [#allocation9]
    $region17: #{tpu_custom_call.1} parent=1 // pred_fallthru
      _
    // Predicated region
    $region18: #{tpu_custom_call.1} parent=1 // pred_check
      _
    $region19: #{tpu_custom_call.1} parent=1 // pred_check_branch
      %60 = sbr.rel (0) target = $region21
    $region20: #{tpu_custom_call.1} parent=1 // pred_region
      %61 = dma.done [#allocation3], 256
    $region21: #{tpu_custom_call.1} parent=1 // pred_fallthru
      _
    // Predicated region
    $region22: #{tpu_custom_call.1} parent=1 // pred_check
      _
    $region23: #{tpu_custom_call.1} parent=1 // pred_check_branch
      %63 = sbr.rel (0) target = $region25
    $region24: #{tpu_custom_call.1} parent=1 // pred_region
      %64 = dma.done [#allocation6], 4096
    $region25: #{tpu_custom_call.1} parent=1 // pred_fallthru
      _
    // Predicated region
    $region26: #{tpu_custom_call.1} parent=1 // pred_check
      _
    $region27: #{tpu_custom_call.1} parent=1 // pred_check_branch
      %66 = sbr.rel (0) target = $region29
    $region28: #{tpu_custom_call.1} parent=1 // pred_region
      %67 = dma.done [#allocation6], 256
    $region29: #{tpu_custom_call.1} parent=1 // pred_fallthru
      _
    // Predicated region
    $region30: #{tpu_custom_call.1} parent=1 // pred_check
      _
    $region31: #{tpu_custom_call.1} parent=1 // pred_check_branch
      %69 = sbr.rel (0) target = $region33
    $region32: #{tpu_custom_call.1} parent=1 // pred_region
      %70 = dma.done [#allocation9], 32
    $region33: #{tpu_custom_call.1} parent=1 // pred_fallthru
      _
    %v71 = vld [vmem:[#allocation2] sm:$0xff]
    %v72 = vld [vmem:[#allocation2 + $0x8] sm:$0xff]
    %v73 = vld [vmem:[#allocation5] sm:$0xff]
    %v74 = vld [vmem:[#allocation5 + $0x8] sm:$0xff]
    %v75 = vld [vmem:[#allocation5 + $0x10] sm:$0xff]
    %v76 = vld [vmem:[#allocation5 + $0x18] sm:$0xff]
    %v77 = vld [vmem:[#allocation5 + $0x20] sm:$0xff]
    %v78 = vld [vmem:[#allocation5 + $0x28] sm:$0xff]
    %v79 = vld [vmem:[#allocation5 + $0x30] sm:$0xff]
    %v80 = vld [vmem:[#allocation5 + $0x38] sm:$0xff]
    %v81 = vld [vmem:[#allocation5 + $0x40] sm:$0xff]
    %v82 = vld [vmem:[#allocation5 + $0x48] sm:$0xff]
    %v83 = vld [vmem:[#allocation5 + $0x50] sm:$0xff]
    %v84 = vld [vmem:[#allocation5 + $0x58] sm:$0xff]
    %v85 = vld [vmem:[#allocation5 + $0x60] sm:$0xff]
    %v86 = vld [vmem:[#allocation5 + $0x68] sm:$0xff]
    %v87 = vld [vmem:[#allocation5 + $0x70] sm:$0xff]
    %v88 = vld [vmem:[#allocation5 + $0x78] sm:$0xff]
    %v89 = vld [vmem:[#allocation5 + $0x80] sm:$0xff]
    %v90 = vld [vmem:[#allocation5 + $0x88] sm:$0xff]
    %v91 = vld [vmem:[#allocation5 + $0x90] sm:$0xff]
    %v92 = vld [vmem:[#allocation5 + $0x98] sm:$0xff]
    %v93 = vld [vmem:[#allocation5 + $0xa0] sm:$0xff]
    %v94 = vld [vmem:[#allocation5 + $0xa8] sm:$0xff]
    %v95 = vld [vmem:[#allocation5 + $0xb0] sm:$0xff]
    %v96 = vld [vmem:[#allocation5 + $0xb8] sm:$0xff]
    %v97 = vld [vmem:[#allocation5 + $0xc0] sm:$0xff]
    %v98 = vld [vmem:[#allocation5 + $0xc8] sm:$0xff]
    %v99 = vld [vmem:[#allocation5 + $0xd0] sm:$0xff]
    %v100 = vld [vmem:[#allocation5 + $0xd8] sm:$0xff]
    %v101 = vld [vmem:[#allocation5 + $0xe0] sm:$0xff]
    %v102 = vld [vmem:[#allocation5 + $0xe8] sm:$0xff]
    %v103 = vld [vmem:[#allocation5 + $0xf0] sm:$0xff]
    %v104 = vld [vmem:[#allocation5 + $0xf8] sm:$0xff]
    %105 = vmatprep.subr.mxu0 0.0
    %106 = vmatpush1.xpose.msra.mxu0 %v73
    %107 = vmatprep.subr.mxu0 0.0
    %108 = vmatpush1.xpose.msra.mxu0 %v74
    %109 = vmatprep.subr.mxu0 0.0
    %110 = vmatpush1.xpose.msra.mxu0 %v75
    %111 = vmatprep.subr.mxu0 0.0
    %112 = vmatpush1.xpose.msra.mxu0 %v76
    %113 = vmatprep.subr.mxu0 0.0
    %114 = vmatpush1.xpose.msra.mxu0 %v77
    %115 = vmatprep.subr.mxu0 0.0
    %116 = vmatpush1.xpose.msra.mxu0 %v78
    %117 = vmatprep.subr.mxu0 0.0
    %118 = vmatpush1.xpose.msra.mxu0 %v79
    %119 = vmatprep.subr.mxu0 0.0
    %120 = vmatpush1.xpose.msra.mxu0 %v80
    %121 = vmatprep.subr.mxu0 0.0
    %122 = vmatpush1.xpose.msra.mxu0 %v81
    %123 = vmatprep.subr.mxu0 0.0
    %124 = vmatpush1.xpose.msra.mxu0 %v82
    %125 = vmatprep.subr.mxu0 0.0
    %126 = vmatpush1.xpose.msra.mxu0 %v83
    %127 = vmatprep.subr.mxu0 0.0
    %128 = vmatpush1.xpose.msra.mxu0 %v84
    %129 = vmatprep.subr.mxu0 0.0
    %130 = vmatpush1.xpose.msra.mxu0 %v85
    %131 = vmatprep.subr.mxu0 0.0
    %132 = vmatpush1.xpose.msra.mxu0 %v86
    %133 = vmatprep.subr.mxu0 0.0
    %134 = vmatpush1.xpose.msra.mxu0 %v87
    %135 = vmatprep.subr.mxu0 0.0
    %136 = vmatpush1.xpose.msra.mxu0 %v88
    %137 = vmatprep.subr.mxu0 0.0
    %138 = vmatpush1.xpose.msra.mxu0 %v89
    %139 = vmatprep.subr.mxu0 0.0
    %140 = vmatpush1.xpose.msra.mxu0 %v90
    %141 = vmatprep.subr.mxu0 0.0
    %142 = vmatpush1.xpose.msra.mxu0 %v91
    %143 = vmatprep.subr.mxu0 0.0
    %144 = vmatpush1.xpose.msra.mxu0 %v92
    %145 = vmatprep.subr.mxu0 0.0
    %146 = vmatpush1.xpose.msra.mxu0 %v93
    %147 = vmatprep.subr.mxu0 0.0
    %148 = vmatpush1.xpose.msra.mxu0 %v94
    %149 = vmatprep.subr.mxu0 0.0
    %150 = vmatpush1.xpose.msra.mxu0 %v95
    %151 = vmatprep.subr.mxu0 0.0
    %152 = vmatpush1.xpose.msra.mxu0 %v96
    %153 = vmatprep.subr.mxu0 0.0
    %154 = vmatpush1.xpose.msra.mxu0 %v97
    %155 = vmatprep.subr.mxu0 0.0
    %156 = vmatpush1.xpose.msra.mxu0 %v98
    %157 = vmatprep.subr.mxu0 0.0
    %158 = vmatpush1.xpose.msra.mxu0 %v99
    %159 = vmatprep.subr.mxu0 0.0
    %160 = vmatpush1.xpose.msra.mxu0 %v100
    %161 = vmatprep.subr.mxu0 0.0
    %162 = vmatpush1.xpose.msra.mxu0 %v101
    %163 = vmatprep.subr.mxu0 0.0
    %164 = vmatpush1.xpose.msra.mxu0 %v102
    %165 = vmatprep.subr.mxu0 0.0
    %166 = vmatpush1.xpose.msra.mxu0 %v103
    %167 = vmatprep.subr.mxu0 0.0
    %168 = vmatpush1.xpose.msra.mxu0 %v104
    %169 = vmatprep.mubr.f32.mxu0 0.0
    %170 = vmatmul.mubr.f32.gmra.mrb[0].mxu0 %v71
    %v171 = vpop.f32.mrb[0].mxu0
    %v172 = vadd.f32 0.0, %v171
    %v173 = vpop.f32.mrb[0].mxu0
    %v174 = vadd.f32 0.0, %v173
    %175 = vmatprep.mubr.f32.mxu0 0.0
    %176 = vmatmul.mubr.f32.gmra.mrb[0].mxu0 %v72
    %v177 = vpop.f32.mrb[0].mxu0
    %v178 = vadd.f32 0.0, %v177
    %v179 = vpop.f32.mrb[0].mxu0
    %v180 = vadd.f32 0.0, %v179
    %181 = vdwg.mxu0
    %v182 = vld [vmem:[#allocation7] sm:$0xff]
    %v183 = vld [vmem:[#allocation7 + $0x8] sm:$0xff]
    %v184 = vmul.f32 %v182, 5.0
    %v185 = vmul.f32 %v183, 5.0
    %v186 = vld [vmem:[#allocation8] sm:$0x3]
    %188 = vset.pattern.permute.xlu0 0
    %189 = vperm.xlu0 %188, %v184
    %v190 = vpop.permute.xlu0 %189
    %193 = vset.pattern.permute.xlu0 0
    %194 = vperm.xlu0 %193, %v185
    %v195 = vpop.permute.xlu0 %194
    %v198 = vlaneseq
    %v199 = vshrl.u32 %v198, 7
    %v200 = vsub.s32 0, %v199
    %v201 = vrot.slane %v186, %v200
    %v202 = vlaneseq
    %v203 = vshrl.u32 %v202, 7
    %v204 = vsub.s32 1, %v203
    %v205 = vrot.slane %v186, %v204
    %v208 = vmul.f32 %v190, %v201
    %v209 = vmul.f32 %v190, %v205
    %v210 = vmul.f32 %v195, %v201
    %v211 = vmul.f32 %v195, %v205
    %v212 = vmul.f32 %v172, %v208
    %v213 = vmul.f32 %v174, %v209
    %v214 = vmul.f32 %v178, %v210
    %v215 = vmul.f32 %v180, %v211
    %v216 = vadd.f32 %v212, 5.0
    %v217 = vadd.f32 %v213, 5.0
    %v218 = vadd.f32 %v214, 5.0
    %v219 = vadd.f32 %v215, 5.0
    %220 = vst [vmem:[#allocation10] sm:$0xff] %v216
    %221 = vst [vmem:[#allocation10 + $0x8] sm:$0xff] %v217
    %222 = vst [vmem:[#allocation10 + $0x10] sm:$0xff] %v218
    %223 = vst [vmem:[#allocation10 + $0x18] sm:$0xff] %v219
    // Predicated region
    $region34: #{tpu_custom_call.1} parent=1 // pred_check
      _
    $region35: #{tpu_custom_call.1} parent=1 // pred_check_branch
      %225 = sbr.rel (0) target = $region37
    $region36: #{tpu_custom_call.1} parent=1 // pred_region
      %s227 = ssub.s32 512, 512
      %228 = vsyncadd [#allocation4], %s227
      %s229 = sshll.u32 [#allocation10], 4
      %s230 = int_to_ptr.vmem [resolvable:$true] %s229
      %235 = dma.vmem_to_hbm [thread:$0]  %s230, 512, %s4, [#allocation4], 256, 256, 16
    $region37: #{tpu_custom_call.1} parent=1 // pred_fallthru
      _
    // Predicated region
    $region38: #{tpu_custom_call.1} parent=1 // pred_check
      _
    $region39: #{tpu_custom_call.1} parent=1 // pred_check_branch
      %237 = sbr.rel (0) target = $region41
    $region40: #{tpu_custom_call.1} parent=1 // pred_region
      %238 = dma.done [#allocation4], 512
    $region41: #{tpu_custom_call.1} parent=1 // pred_fallthru
      _
    %239 = vsyncpa [#allocation3], 1
    %240 = vsyncpa [#allocation6], 1
    %241 = vsyncpa [#allocation9], 1
    %242 = vsyncpa [#allocation4], 1

</llo_original>
